<compile_context>
chip_gen: v7x
topology: tpu7x:2x2x1
jax: 0.10.0
libtpu: 0.0.40
codegen_flags: <defaults>
</compile_context>

<pallas_src>
import functools

import jax
import jax.numpy as jnp
from jax.experimental import pallas as pl
from jax.experimental.pallas import tpu as pltpu


def _round_up(x: int, m: int) -> int:
    return ((x + m - 1) // m) * m


def _cdiv(a: int, b: int) -> int:
    return -(-a // b)


def _largest_tile(total: int, cap: int, unit: int) -> int:
    """Largest multiple of `unit` that divides `total` and is <= cap."""
    cap = max(unit, min(cap, total))
    best, t = unit, unit
    while t <= cap:
        if total % t == 0:
            best = t
        t += unit
    return best


def _vmem_budget():
    """(working-set budget, vmem_limit_bytes) scaled to this chip's VMEM."""
    cap = 64 << 20  # conservative fallback (v7x-sized)
    try:
        info = pltpu.get_tpu_info()
        cap = int(getattr(info, "vmem_capacity_bytes", cap)) or cap
    except Exception:  # pragma: no cover - info query unavailable
        pass
    budget = int(cap * 0.45)                      # double-buffered working set
    limit = min(int(cap * 0.85), budget + (32 << 20))
    return budget, limit


# ----------------------------- Pallas kernels --------------------------------
def _classifier_kernel_acc(x_ref, w_ref, o_ref, acc_ref):
    # x_ref : (tm, tk) activations, w_ref : (tk, tn) weight (already W^T),
    # o_ref : (tm, tn) logits, acc_ref : (tm, tn) resident f32 accumulator.
    @pl.when(pl.program_id(2) == 0)
    def _init():
        acc_ref[...] = jnp.zeros_like(acc_ref)

    acc_ref[...] += jnp.dot(
        x_ref[...], w_ref[...], preferred_element_type=jnp.float32
    )

    @pl.when(pl.program_id(2) == pl.num_programs(2) - 1)
    def _writeback():
        o_ref[...] = acc_ref[...].astype(o_ref.dtype)


def _classifier_kernel_f32out(x_ref, w_ref, o_ref):
    # f32 output: accumulate straight into the resident output block and skip
    # the separate f32 scratch (saves tm*tn*4 bytes of VMEM).
    @pl.when(pl.program_id(2) == 0)
    def _init():
        o_ref[...] = jnp.zeros_like(o_ref)

    o_ref[...] += jnp.dot(
        x_ref[...], w_ref[...], preferred_element_type=jnp.float32
    )


# ------------------------- one-time weight preparation -----------------------
def prepare_classifier_weight(weight, compute_dtype=jnp.bfloat16):
    """One-time (per parameter update) prep of the classifier weight.

    Casts to the compute dtype, transposes to (feat_dim, num_classes) so the
    kernel's RHS is MXU-native (no per-tile transpose), and zero-pads both
    dims to multiples of 128.  Amortizes to zero over forward calls.
    """
    C, F = weight.shape
    w = weight.astype(compute_dtype).T  # (F, C)
    Fp, Cp = _round_up(F, 128), _round_up(C, 128)
    if (Fp, Cp) != (F, C):
        w = jnp.pad(w, ((0, Fp - F), (0, Cp - C)))
    return w, (C, F)


# ------------------------------ host wrapper ---------------------------------
def classifier_forward(
    x,
    weight,
    *,
    weight_is_prepared=False,
    num_classes=None,
    feat_dim=None,
    compute_dtype=jnp.bfloat16,
    out_dtype=None,
    tm_max: int = 1024,
    tn_max: int = 2048,
    tk_max: int = 2048,
    weight_buffers: int = 2,
    min_pallas_work: int = 1 << 18,
):
    """logits = x @ W^T

    x      : (batch, feat_dim)
    weight : either the raw PyTorch parameter (num_classes, feat_dim) or the
             output of prepare_classifier_weight (preferred: avoids per-call
             HBM cast/pad/transpose traffic on the big weight).
    """
    if not weight_is_prepared:
        # Slow path: per-call cast/transpose/pad of the full weight.
        weight, (C, F) = prepare_classifier_weight(weight, compute_dtype)
    else:
        assert num_classes is not None and feat_dim is not None, (
            "pass num_classes/feat_dim with a prepared weight"
        )
        C, F = num_classes, feat_dim
        compute_dtype = weight.dtype

    Fp, Cp = weight.shape
    B, Fx = x.shape
    assert Fx == F, "feat_dim mismatch"
    out_dtype = out_dtype or x.dtype
    out_is_f32 = jnp.dtype(out_dtype) == jnp.dtype(jnp.float32)

    # Size-gated fallback: tiny heads are cheaper left to XLA fusion.
    if B * C * F < min_pallas_work:
        xc = x.astype(compute_dtype)
        if Fp != F:
            xc = jnp.pad(xc, ((0, 0), (0, Fp - F)))
        out = jnp.dot(xc, weight, preferred_element_type=jnp.float32)
        return out[:, :C].astype(out_dtype)

    bw = jnp.dtype(compute_dtype).itemsize
    bo = jnp.dtype(out_dtype).itemsize
    sub = max(8, 32 // bw, 32 // bo)  # sublane multiple for all block dims

    # --- M tile: cover the whole batch when possible (weight read once) ------
    n_m = max(1, _cdiv(B, tm_max))
    tm = _round_up(_cdiv(B, n_m), sub)
    Bp = _round_up(B, tm)

    # --- N / K tiles: as large as the chip's VMEM budget allows --------------
    budget, vmem_limit = _vmem_budget()
    wbuf = max(2, weight_buffers)

    def working_set(tn_, tk_):
        return (
            2 * tm * tk_ * bw              # x tiles (double buffered)
            + wbuf * tn_ * tk_ * bw        # weight tiles
            + 2 * tm * tn_ * bo            # output tiles
            + (0 if out_is_f32 else tm * tn_ * 4)  # f32 accumulator scratch
        )

    tn = _largest_tile(Cp, tn_max, 128)
    tk = _largest_tile(Fp, tk_max, 128)
    while working_set(tn, tk) > budget and (tn > 128 or tk > 128):
        if tk >= tn and tk > 128:
            tk = _largest_tile(Fp, tk // 2, 128)
        else:
            tn = _largest_tile(Cp, tn // 2, 128)

    # --- pad only the (small) activation per call -----------------------------
    xc = x.astype(compute_dtype)
    if (Bp, Fp) != (B, F):
        xc = jnp.pad(xc, ((0, Bp - B), (0, Fp - F)))

    grid = (Bp // tm, Cp // tn, Fp // tk)

    w_spec_kwargs = {}
    if weight_buffers != 2:
        w_spec_kwargs = dict(pipeline_mode=pl.Buffered(weight_buffers))

    in_specs = [
        pl.BlockSpec((tm, tk), lambda i, j, k: (i, k)),
        pl.BlockSpec((tk, tn), lambda i, j, k: (k, j), **w_spec_kwargs),
    ]
    out_spec = pl.BlockSpec((tm, tn), lambda i, j, k: (i, j))

    if out_is_f32:
        kernel = _classifier_kernel_f32out
        scratch = []
    else:
        kernel = _classifier_kernel_acc
        scratch = [pltpu.VMEM((tm, tn), jnp.float32)]

    out = pl.pallas_call(
        kernel,
        out_shape=jax.ShapeDtypeStruct((Bp, Cp), out_dtype),
        grid_spec=pltpu.PrefetchScalarGridSpec(
            num_scalar_prefetch=0,
            grid=grid,
            in_specs=in_specs,
            out_specs=out_spec,
            scratch_shapes=scratch,
        ),
        compiler_params=pltpu.CompilerParams(
            dimension_semantics=("parallel", "parallel", "arbitrary"),
            vmem_limit_bytes=vmem_limit,
        ),
    )(xc, weight)

    if (Bp, Cp) != (B, C):
        out = out[:B, :C]
    return out


# ------------------------ deterministic init (matches __init__) --------------
def init_classifier_weight(key, num_classes, feat_dim, dtype=jnp.float32):
    # torch: weight.uniform_(-1, 1).renorm_(2, 0, 1e-5).mul_(1e5)
    w = jax.random.uniform(
        key, (num_classes, feat_dim), dtype=jnp.float32, minval=-1.0, maxval=1.0
    )
    norms = jnp.linalg.norm(w, axis=1, keepdims=True)
    maxnorm = 1e-5
    scale = jnp.where(norms > maxnorm, maxnorm / (norms + 1e-7), 1.0)
    w = w * scale * 1e5  # -> (approximately) unit-norm rows
    return w.astype(dtype)


# --------------------------------- main ---------------------------------------
if __name__ == "__main__":
    key = jax.random.PRNGKey(0)
    k_w, k_x = jax.random.split(key)

    # Small demo shapes; tile caps chosen so the grid is (1, 3, 2) and the
    # resident-accumulator / K-sweep path is exercised.
    batch, feat_dim, num_classes = 48, 512, 384

    weight = init_classifier_weight(k_w, num_classes, feat_dim, jnp.float32)
    x = jax.random.normal(k_x, (batch, feat_dim), dtype=jnp.float32)

    # One-time weight preparation (bf16 cast + transpose + pad), reused by
    # every forward call -> no per-call weight HBM round trips.
    w_prep, (C, F) = prepare_classifier_weight(weight, jnp.bfloat16)

    fwd = functools.partial(
        classifier_forward,
        weight_is_prepared=True,
        num_classes=C,
        feat_dim=F,
        tn_max=128,
        tk_max=256,
        min_pallas_work=0,
    )

    # Path 1: f32 output (direct accumulation into the output block).
    logits_f32 = jax.block_until_ready(fwd(x, w_prep, out_dtype=jnp.float32))
    # Path 2: bf16 output (f32 VMEM scratch accumulator + writeback).
    logits_bf16 = jax.block_until_ready(fwd(x, w_prep, out_dtype=jnp.bfloat16))

    ref = jnp.dot(
        x.astype(jnp.bfloat16),
        weight.astype(jnp.bfloat16).T,
        preferred_element_type=jnp.float32,
    )

    assert logits_f32.shape == (batch, num_classes)
    assert logits_bf16.shape == (batch, num_classes)
    assert jnp.allclose(logits_f32, ref, atol=1e-2, rtol=1e-2), "f32 mismatch"
    assert jnp.allclose(
        logits_bf16.astype(jnp.float32), ref, atol=5e-2, rtol=2e-2
    ), "bf16 mismatch"

    print("KERNEL_OK")
</pallas_src>

<mosaic_0001>
module attributes {stable_mosaic.version = 11 : i64} {
  func.func @_classifier_kernel_f32out(%arg0: i32, %arg1: i32, %arg2: i32, %arg3: memref<48x256xbf16, #tpu.memory_space<vmem>>, %arg4: memref<256x128xbf16, #tpu.memory_space<vmem>>, %arg5: memref<48x128xf32, #tpu.memory_space<vmem>>) attributes {dimension_semantics = [#tpu.dimension_semantics<parallel>, #tpu.dimension_semantics<parallel>, #tpu.dimension_semantics<arbitrary>], iteration_bounds = array<i64: 1, 3, 2>, scalar_prefetch = 0 : i64, scratch_operands = 0 : i64, tpu.core_type = #tpu.core_type<tc>, window_params = [{transform_indices = @transform_0, window_bounds = array<i64: 48, 256>}, {transform_indices = @transform_1, window_bounds = array<i64: 256, 128>}, {transform_indices = @transform_2, window_bounds = array<i64: 48, 128>}]} {
    %c0_i32 = arith.constant 0 : i32
    %0 = arith.cmpi eq, %arg2, %c0_i32 : i32
    %1 = arith.extui %0 : i1 to i32
    %c0_i32_0 = arith.constant 0 : i32
    %2 = arith.cmpi ne, %1, %c0_i32_0 : i32
    scf.if %2 {
      %cst_8 = arith.constant 0.000000e+00 : f32
      %9 = vector.broadcast %cst_8 : f32 to vector<48x128xf32>
      %c0_9 = arith.constant 0 : index
      %c0_10 = arith.constant 0 : index
      %10 = vector.load %arg5[%c0_9, %c0_10] : memref<48x128xf32, #tpu.memory_space<vmem>>, vector<48x128xf32>
      tpu.vector_store %arg5[%c0_9, %c0_10], %9 {strides = array<i32>} : memref<48x128xf32, #tpu.memory_space<vmem>>, vector<48x128xf32>,
    } else {
    }
    %c0 = arith.constant 0 : index
    %c0_1 = arith.constant 0 : index
    %3 = vector.load %arg5[%c0, %c0_1] : memref<48x128xf32, #tpu.memory_space<vmem>>, vector<48x128xf32>
    %c0_2 = arith.constant 0 : index
    %c0_3 = arith.constant 0 : index
    %4 = vector.load %arg3[%c0_2, %c0_3] : memref<48x256xbf16, #tpu.memory_space<vmem>>, vector<48x256xbf16>
    %c0_4 = arith.constant 0 : index
    %c0_5 = arith.constant 0 : index
    %5 = vector.load %arg4[%c0_4, %c0_5] : memref<256x128xbf16, #tpu.memory_space<vmem>>, vector<256x128xbf16>
    %cst = arith.constant dense<0.000000e+00> : vector<48x128xf32>
    %6 = tpu.matmul %4, %5, %cst {dimension_numbers = #tpu.dot_dimension_numbers<[1], [0], [0], [1], [0, 0, 1, 1], [], []>} : vector<48x256xbf16>, vector<256x128xbf16>, vector<48x128xf32> -> vector<48x128xf32>
    %7 = arith.addf %3, %6 : vector<48x128xf32>
    %c0_6 = arith.constant 0 : index
    %c0_7 = arith.constant 0 : index
    %8 = vector.load %arg5[%c0_6, %c0_7] : memref<48x128xf32, #tpu.memory_space<vmem>>, vector<48x128xf32>
    tpu.vector_store %arg5[%c0_6, %c0_7], %7 {strides = array<i32>} : memref<48x128xf32, #tpu.memory_space<vmem>>, vector<48x128xf32>,
    return
  }
  func.func @transform_0(%arg0: i32, %arg1: i32, %arg2: i32) -> (i32, i32) {
    %c0_i32 = arith.constant 0 : i32
    return %arg0, %arg2 : i32, i32
  }
  func.func @transform_1(%arg0: i32, %arg1: i32, %arg2: i32) -> (i32, i32) {
    %c0_i32 = arith.constant 0 : i32
    return %arg2, %arg1 : i32, i32
  }
  func.func @transform_2(%arg0: i32, %arg1: i32, %arg2: i32) -> (i32, i32) {
    %c0_i32 = arith.constant 0 : i32
    return %arg0, %arg1 : i32, i32
  }
}

</mosaic_0001>

<llo_original>
// kernel: tpu_custom_call.1
$region0: #{tpu_custom_call.1}
  #allocation0 [shape = 'u32[]', space=smem, size = 0x4, offset = 0x4, fixed_abs, tag = 'smem constant byte address 0x4 - core index']
  #allocation1 [shape = 'u32[144,128]{1,0:T(1,128)}', space=vmem, size = 0x12000, scoped, tag = 'internal scratch']
  %s0 = inlined_call_operand.hbm [shape: bf16[48,512], index: 0, kind: input, shape index: {}]
  %s1 = inlined_call_operand.hbm [shape: bf16[512,384], index: 1, kind: input, shape index: {}]
  %s2 = inlined_call_operand.hbm [shape: f32[48,384], index: 2, kind: output, shape index: {}]
  %s3 = sld [smem:[#allocation0]]
  $region53: #{tpu_custom_call.1} parent=0
    _
  %s5 = ssub.s32 1, %s3
  %s6 = scalar_select 0, %s5, %s3
  $region1: #{tpu_custom_call.1} parent=0
    #allocation2 [shape = 'u8[49152]{0}', space=vmem, size = 0xc000, scoped, tag = 'input window, operand 0']
    #allocation3 [shape = 's32[2]{0}', space=sflag, size = 0x8, scoped, tag = 'scoped memory for tpu_custom_call.1']
    #allocation4 [shape = 's32[2]{0}', space=sflag, size = 0x8, scoped, tag = 'scoped memory for tpu_custom_call.1']
    #allocation5 [shape = 'u8[131072]{0}', space=vmem, size = 0x20000, scoped, tag = 'input window, operand 1']
    #allocation6 [shape = 's32[2]{0}', space=sflag, size = 0x8, scoped, tag = 'scoped memory for tpu_custom_call.1']
    #allocation7 [shape = 'u8[49152]{0}', space=vmem, size = 0xc000, scoped, tag = 'output window, operand 0']
    %7 = vsyncpa [#allocation3], 0
    %s8 = scalar_lea.sflag [#allocation3], 1
    %9 = vsyncpa %s8, 0
    %10 = vsyncpa [#allocation6], 0
    %s11 = scalar_lea.sflag [#allocation6], 1
    %12 = vsyncpa %s11, 0
    %13 = vsyncpa [#allocation4], 0
    %s14 = scalar_lea.sflag [#allocation4], 1
    %15 = vsyncpa %s14, 0
    loop: start=0, step=1, limit=8
    $region2: #{tpu_custom_call.1} parent=1 // loop_pre_header
      _
    $region3: #{tpu_custom_call.1} parent=1 // loop_header
      %s17 = sphi 0, %s21
      %p18 = scmp.ge.s32.totalorder %s17, 8
      %s24 = sphi 0, %s43
      %s25 = sphi 0, %s39
      %s26 = sphi 0, %s35
      %s27 = sphi 0, %s24
      %s28 = sphi 0, %s25
      %s29 = sphi 0, %s26
      %s30 = sphi 0, %s27
      %s31 = sphi 0, %s28
      %s32 = sphi 0, %s29
      %s48 = sphi 0, %s50
      %s51 = sphi 0, %s48
      %s52 = sphi 0, %s51
      %s68 = sphi 0, %s52
      %s76 = sphi 0, %s78
      %s79 = sphi 0, %s76
      %s80 = sphi 0, %s79
      %s96 = sphi 0, %s80
      %s104 = sphi 0, %s106
      %s107 = sphi 0, %s104
      %s108 = sphi 0, %s107
      %s124 = sphi 0, %s108
    $region4: #{tpu_custom_call.1} parent=1 // loop_header_branch
      %20 = sbr.rel (%p18) target = $region8
    $region5: #{tpu_custom_call.1} parent=1 // loop_body
      %s22 = ssub.s32 %s17, 1
      %s23 = ssub.s32 %s17, 2
      %s33 = sadd.s32 1, %s26
      %p34 = scmp.ge.s32.totalorder %s33, 2
      %s35 = scalar_select %p34, 0, %s33
      %s36 = sadd.s32 1, %s25
      %s37 = scalar_select %p34, %s36, %s25
      %p38 = scmp.ge.s32.totalorder %s37, 3
      %s39 = scalar_select %p38, 0, %s37
      %s40 = sadd.s32 1, %s24
      %s41 = scalar_select %p38, %s40, %s24
      %p42 = scmp.ge.s32.totalorder %s41, 1
      %s43 = scalar_select %p42, 0, %s41
      %s44 = ssub.s32 %s24, %s43
      %s45 = ssub.s32 %s26, %s35
      %s46 = sor.u32 %s44, %s45
      %p47 = scmp.eq.s32.totalorder %s46, 0
      %s49 = sadd.s32 %s48, 1
      %s50 = scalar_select %p47, %s48, %s49
      %p53 = pneg %p47
      %p54 = scmp.eq.s32.totalorder %s17, 5
      %p55 = por %p53, %p54
      %p56 = scmp.ne.s32.totalorder %s48, %s51
      %p57 = scmp.eq.s32.totalorder %s17, 0
      %p58 = por %p56, %p57
      %p59 = scmp.ne.s32.totalorder %s48, %s51
      %p60 = scmp.eq.s32.totalorder %s22, 5
      %p61 = por %p59, %p60
      %p62 = scmp.ne.s32.totalorder %s51, %s52
      %p63 = scmp.eq.s32.totalorder %s22, 0
      %p64 = por %p62, %p63
      %p65 = scmp.ne.s32.totalorder %s51, %s52
      %p66 = scmp.eq.s32.totalorder %s23, 5
      %p67 = por %p65, %p66
      %p69 = scmp.ne.s32.totalorder %s52, %s68
      %p70 = scmp.eq.s32.totalorder %s23, 0
      %p71 = por %p69, %p70
      %s72 = ssub.s32 %s26, %s35
      %s73 = ssub.s32 %s25, %s39
      %s74 = sor.u32 %s72, %s73
      %p75 = scmp.eq.s32.totalorder %s74, 0
      %s77 = sadd.s32 %s76, 1
      %s78 = scalar_select %p75, %s76, %s77
      %p81 = pneg %p75
      %p82 = scmp.eq.s32.totalorder %s17, 5
      %p83 = por %p81, %p82
      %p84 = scmp.ne.s32.totalorder %s76, %s79
      %p85 = scmp.eq.s32.totalorder %s17, 0
      %p86 = por %p84, %p85
      %p87 = scmp.ne.s32.totalorder %s76, %s79
      %p88 = scmp.eq.s32.totalorder %s22, 5
      %p89 = por %p87, %p88
      %p90 = scmp.ne.s32.totalorder %s79, %s80
      %p91 = scmp.eq.s32.totalorder %s22, 0
      %p92 = por %p90, %p91
      %p93 = scmp.ne.s32.totalorder %s79, %s80
      %p94 = scmp.eq.s32.totalorder %s23, 5
      %p95 = por %p93, %p94
      %p97 = scmp.ne.s32.totalorder %s80, %s96
      %p98 = scmp.eq.s32.totalorder %s23, 0
      %p99 = por %p97, %p98
      %s100 = ssub.s32 %s24, %s43
      %s101 = ssub.s32 %s25, %s39
      %s102 = sor.u32 %s100, %s101
      %p103 = scmp.eq.s32.totalorder %s102, 0
      %s105 = sadd.s32 %s104, 1
      %s106 = scalar_select %p103, %s104, %s105
      %p109 = pneg %p103
      %p110 = scmp.eq.s32.totalorder %s17, 5
      %p111 = por %p109, %p110
      %p112 = scmp.ne.s32.totalorder %s104, %s107
      %p113 = scmp.eq.s32.totalorder %s17, 0
      %p114 = por %p112, %p113
      %p115 = scmp.ne.s32.totalorder %s104, %s107
      %p116 = scmp.eq.s32.totalorder %s22, 5
      %p117 = por %p115, %p116
      %p118 = scmp.ne.s32.totalorder %s107, %s108
      %p119 = scmp.eq.s32.totalorder %s22, 0
      %p120 = por %p118, %p119
      %p121 = scmp.ne.s32.totalorder %s107, %s108
      %p122 = scmp.eq.s32.totalorder %s23, 5
      %p123 = por %p121, %p122
      %p125 = scmp.ne.s32.totalorder %s108, %s124
      %p126 = scmp.eq.s32.totalorder %s23, 0
      %p127 = por %p125, %p126
      %p128 = scmp.le.s32.totalorder 1, %s17
      %p129 = scmp.lt.s32.totalorder %s17, 7
      %p130 = pnand %p128, %p129
      %p131 = pneg %p130
      // Predicated region
      $region9: #{tpu_custom_call.1} parent=5 // pred_check
        _
      $region10: #{tpu_custom_call.1} parent=5 // pred_check_branch
        %133 = sbr.rel (%p130) target = $region12
      $region11: #{tpu_custom_call.1} parent=5 // pred_region
        %s134 = ssub.s32 %s17, 1
      $region12: #{tpu_custom_call.1} parent=5 // pred_fallthru
        _
      %p135 = scmp.lt.s32.totalorder %s17, 6
      // Predicated region
      $region13: #{tpu_custom_call.1} parent=5 // pred_check
        %p136 = pneg %p135
      $region14: #{tpu_custom_call.1} parent=5 // pred_check_branch
        %138 = sbr.rel (%p136) target = $region16
      $region15: #{tpu_custom_call.1} parent=5 // pred_region
        // Predicated region
        $region17: #{tpu_custom_call.1} parent=15 // pred_check
          %p139 = pneg %p58
        $region18: #{tpu_custom_call.1} parent=15 // pred_check_branch
          %141 = sbr.rel (%p139) target = $region20
        $region19: #{tpu_custom_call.1} parent=15 // pred_region
          %s142 = sand.u32 %s48, 1
          %s143 = scalar_lea.sflag [#allocation3], %s142
          %s144 = sand.u32 %s48, 1
          %s145 = smul.addr %s144, 48
          %s146 = scalar_lea.vmem [#allocation2], %s145
          %s147 = smul.u32 6, %s24
          %s148 = smul.u32 2, %s26
          %s150 = ssub.s32 768, 768
          %151 = vsyncadd %s143, %s150
          %s152 = smul.addr %s147, 4
          %s153 = sadd.s32 %s148, %s152
          %s154 = smul.addr %s153, 64
          %s155 = scalar_lea.hbm %s0, %s154
          %s156 = sshll.u32 %s146, 4
          %s157 = int_to_ptr.vmem [resolvable:$true] %s156
          %162 = dma.hbm_to_vmem [thread:$0]  %s155, 768, %s157, %s143, 256, 128, 8
        $region20: #{tpu_custom_call.1} parent=15 // pred_fallthru
          _
        // Predicated region
        $region21: #{tpu_custom_call.1} parent=15 // pred_check
          %p163 = pneg %p86
        $region22: #{tpu_custom_call.1} parent=15 // pred_check_branch
          %165 = sbr.rel (%p163) target = $region24
        $region23: #{tpu_custom_call.1} parent=15 // pred_region
          %s166 = sand.u32 %s76, 1
          %s167 = scalar_lea.sflag [#allocation6], %s166
          %s168 = sand.u32 %s76, 1
          %s169 = smul.addr %s168, 128
          %s170 = scalar_lea.vmem [#allocation5], %s169
          %s171 = smul.u32 32, %s26
          %s173 = ssub.s32 2048, 2048
          %174 = vsyncadd %s167, %s173
          %s175 = smul.addr %s171, 3
          %s176 = sadd.s32 %s25, %s175
          %s177 = smul.addr %s176, 64
          %s178 = scalar_lea.hbm %s1, %s177
          %s179 = sshll.u32 %s170, 4
          %s180 = int_to_ptr.vmem [resolvable:$true] %s179
          %185 = dma.hbm_to_vmem [thread:$0]  %s178, 2048, %s180, %s167, 192, 64, 4
        $region24: #{tpu_custom_call.1} parent=15 // pred_fallthru
          _
      $region16: #{tpu_custom_call.1} parent=5 // pred_fallthru
        _
      %p186 = scmp.le.s32.totalorder 1, %s17
      %p187 = scmp.lt.s32.totalorder %s17, 7
      %p188 = pnand %p186, %p187
      %p189 = pneg %p188
      // Predicated region
      $region25: #{tpu_custom_call.1} parent=5 // pred_check
        _
      $region26: #{tpu_custom_call.1} parent=5 // pred_check_branch
        %191 = sbr.rel (%p188) target = $region28
      $region27: #{tpu_custom_call.1} parent=5 // pred_region
        %s192 = ssub.s32 %s17, 1
        %s193 = sand.u32 %s51, 1
        %s194 = scalar_lea.sflag [#allocation3], %s193
        %s195 = sand.u32 %s51, 1
        %s196 = smul.addr %s195, 48
        %s197 = scalar_lea.vmem [#allocation2], %s196
        // Predicated region
        $region29: #{tpu_custom_call.1} parent=27 // pred_check
          %p198 = pneg %p64
        $region30: #{tpu_custom_call.1} parent=27 // pred_check_branch
          %200 = sbr.rel (%p198) target = $region32
        $region31: #{tpu_custom_call.1} parent=27 // pred_region
          %201 = dma.done %s194, 768
        $region32: #{tpu_custom_call.1} parent=27 // pred_fallthru
          _
        %s202 = sand.u32 %s79, 1
        %s203 = scalar_lea.sflag [#allocation6], %s202
        %s204 = sand.u32 %s79, 1
        %s205 = smul.addr %s204, 128
        %s206 = scalar_lea.vmem [#allocation5], %s205
        // Predicated region
        $region33: #{tpu_custom_call.1} parent=27 // pred_check
          %p207 = pneg %p92
        $region34: #{tpu_custom_call.1} parent=27 // pred_check_branch
          %209 = sbr.rel (%p207) target = $region36
        $region35: #{tpu_custom_call.1} parent=27 // pred_region
          %210 = dma.done %s203, 2048
        $region36: #{tpu_custom_call.1} parent=27 // pred_fallthru
          _
        %s211 = sand.u32 %s51, 1
        %s212 = scalar_lea.sflag [#allocation3], %s211
        %s213 = sand.u32 %s51, 1
        %s214 = smul.addr %s213, 48
        %s215 = scalar_lea.vmem [#allocation2], %s214
        %p216 = pneg %p64
        %p217 = pneg %p61
        %s218 = sand.u32 %s79, 1
        %s219 = scalar_lea.sflag [#allocation6], %s218
        %s220 = sand.u32 %s79, 1
        %s221 = smul.addr %s220, 128
        %s222 = scalar_lea.vmem [#allocation5], %s221
        %p223 = pneg %p92
        %p224 = pneg %p89
        %p225 = pneg %p120
        %p226 = pneg %p117
        %s227 = sand.u32 %s107, 1
        %s228 = scalar_lea.sflag [#allocation4], %s227
        %s229 = sand.u32 %s107, 1
        %s230 = smul.addr %s229, 48
        %s231 = scalar_lea.vmem [#allocation7], %s230
        %s232 = smul.u32 6, %s27
        %s233 = smul.u32 2, %s29
        %s234 = smul.u32 32, %s29
        %s235 = smul.u32 6, %s27
        %p237 = scmp.eq.s32.totalorder %s29, 0
        // Predicated region
        $region37: #{tpu_custom_call.1} parent=27 // pred_check
          %p238 = pneg %p237
        $region38: #{tpu_custom_call.1} parent=27 // pred_check_branch
          %240 = sbr.rel (%p238) target = $region40
        $region39: #{tpu_custom_call.1} parent=27 // pred_region
          %241 = vst [vmem:[%s231] sm:$0xff] 0.0
          %242 = vst [vmem:[%s231 + $0x8] sm:$0xff] 0.0
          %243 = vst [vmem:[%s231 + $0x10] sm:$0xff] 0.0
          %244 = vst [vmem:[%s231 + $0x18] sm:$0xff] 0.0
          %245 = vst [vmem:[%s231 + $0x20] sm:$0xff] 0.0
          %246 = vst [vmem:[%s231 + $0x28] sm:$0xff] 0.0
        $region40: #{tpu_custom_call.1} parent=27 // pred_fallthru
          _
        %v247 = vld [vmem:[%s231] sm:$0xff]
        %v248 = vld [vmem:[%s231 + $0x8] sm:$0xff]
        %v249 = vld [vmem:[%s231 + $0x10] sm:$0xff]
        %v250 = vld [vmem:[%s231 + $0x18] sm:$0xff]
        %v251 = vld [vmem:[%s231 + $0x20] sm:$0xff]
        %v252 = vld [vmem:[%s231 + $0x28] sm:$0xff]
        %v253 = vld [vmem:[%s197] sm:$0xff]
        %v254 = vld [vmem:[%s197 + $0x8] sm:$0xff]
        %v255 = vld [vmem:[%s197 + $0x10] sm:$0xff]
        %v256 = vld [vmem:[%s197 + $0x18] sm:$0xff]
        %v257 = vld [vmem:[%s197 + $0x20] sm:$0xff]
        %v258 = vld [vmem:[%s197 + $0x28] sm:$0xff]
        %v259 = vld [vmem:[%s206] sm:$0xf]
        %v260 = vld [vmem:[%s206 + $0x4] sm:$0xf]
        %v261 = vld [vmem:[%s206 + $0x8] sm:$0xf]
        %v262 = vld [vmem:[%s206 + $0xc] sm:$0xf]
        %v263 = vld [vmem:[%s206 + $0x10] sm:$0xf]
        %v264 = vld [vmem:[%s206 + $0x14] sm:$0xf]
        %v265 = vld [vmem:[%s206 + $0x18] sm:$0xf]
        %v266 = vld [vmem:[%s206 + $0x1c] sm:$0xf]
        %v267 = vld [vmem:[%s206 + $0x20] sm:$0xf]
        %v268 = vld [vmem:[%s206 + $0x24] sm:$0xf]
        %v269 = vld [vmem:[%s206 + $0x28] sm:$0xf]
        %v270 = vld [vmem:[%s206 + $0x2c] sm:$0xf]
        %v271 = vld [vmem:[%s206 + $0x30] sm:$0xf]
        %v272 = vld [vmem:[%s206 + $0x34] sm:$0xf]
        %v273 = vld [vmem:[%s206 + $0x38] sm:$0xf]
        %v274 = vld [vmem:[%s206 + $0x3c] sm:$0xf]
        %v275 = vld [vmem:[%s206 + $0x40] sm:$0xf]
        %v276 = vld [vmem:[%s206 + $0x44] sm:$0xf]
        %v277 = vld [vmem:[%s206 + $0x48] sm:$0xf]
        %v278 = vld [vmem:[%s206 + $0x4c] sm:$0xf]
        %v279 = vld [vmem:[%s206 + $0x50] sm:$0xf]
        %v280 = vld [vmem:[%s206 + $0x54] sm:$0xf]
        %v281 = vld [vmem:[%s206 + $0x58] sm:$0xf]
        %v282 = vld [vmem:[%s206 + $0x5c] sm:$0xf]
        %v283 = vld [vmem:[%s206 + $0x60] sm:$0xf]
        %v284 = vld [vmem:[%s206 + $0x64] sm:$0xf]
        %v285 = vld [vmem:[%s206 + $0x68] sm:$0xf]
        %v286 = vld [vmem:[%s206 + $0x6c] sm:$0xf]
        %v287 = vld [vmem:[%s206 + $0x70] sm:$0xf]
        %v288 = vld [vmem:[%s206 + $0x74] sm:$0xf]
        %v289 = vld [vmem:[%s206 + $0x78] sm:$0xf]
        %v290 = vld [vmem:[%s206 + $0x7c] sm:$0xf]
        %v297 = vunpack.c.l.b16 %v253
        %v298 = vunpack.c.h.b16 %v253
        %v299 = vunpack.c.l.b16 %v254
        %v300 = vunpack.c.h.b16 %v254
        %v301 = vunpack.c.l.b16 %v255
        %v302 = vunpack.c.h.b16 %v255
        %v303 = vunpack.c.l.b16 %v256
        %v304 = vunpack.c.h.b16 %v256
        %v305 = vunpack.c.l.b16 %v257
        %v306 = vunpack.c.h.b16 %v257
        %v307 = vunpack.c.l.b16 %v258
        %v308 = vunpack.c.h.b16 %v258
        %v309 = vpack.c.b16 %v299, %v297
        %v310 = vpack.c.b16 %v300, %v298
        %v311 = vpack.c.b16 %v303, %v301
        %v312 = vpack.c.b16 %v304, %v302
        %v313 = vpack.c.b16 %v307, %v305
        %v314 = vpack.c.b16 %v308, %v306
        %v353 = vunpack.c.l.b16 %v259
        %v354 = vunpack.c.l.b16 %v260
        %v355 = vunpack.c.l.b16 %v261
        %v356 = vunpack.c.l.b16 %v262
        %v357 = vunpack.c.l.b16 %v263
        %v358 = vunpack.c.l.b16 %v264
        %v359 = vunpack.c.l.b16 %v265
        %v360 = vunpack.c.l.b16 %v266
        %v361 = vunpack.c.l.b16 %v267
        %v362 = vunpack.c.l.b16 %v268
        %v363 = vunpack.c.l.b16 %v269
        %v364 = vunpack.c.l.b16 %v270
        %v365 = vunpack.c.l.b16 %v271
        %v366 = vunpack.c.l.b16 %v272
        %v367 = vunpack.c.l.b16 %v273
        %v368 = vunpack.c.l.b16 %v274
        %v369 = vunpack.c.l.b16 %v275
        %v370 = vunpack.c.l.b16 %v276
        %v371 = vunpack.c.l.b16 %v277
        %v372 = vunpack.c.l.b16 %v278
        %v373 = vunpack.c.l.b16 %v279
        %v374 = vunpack.c.l.b16 %v280
        %v375 = vunpack.c.l.b16 %v281
        %v376 = vunpack.c.l.b16 %v282
        %v377 = vunpack.c.l.b16 %v283
        %v378 = vunpack.c.l.b16 %v284
        %v379 = vunpack.c.l.b16 %v285
        %v380 = vunpack.c.l.b16 %v286
        %v381 = vunpack.c.l.b16 %v287
        %v382 = vunpack.c.l.b16 %v288
        %v383 = vunpack.c.l.b16 %v289
        %v384 = vunpack.c.l.b16 %v290
        %v385 = vpack.c.b16 %v354, %v353
        %v386 = vpack.c.b16 %v356, %v355
        %v387 = vpack.c.b16 %v358, %v357
        %v388 = vpack.c.b16 %v360, %v359
        %v389 = vpack.c.b16 %v362, %v361
        %v390 = vpack.c.b16 %v364, %v363
        %v391 = vpack.c.b16 %v366, %v365
        %v392 = vpack.c.b16 %v368, %v367
        %v393 = vpack.c.b16 %v370, %v369
        %v394 = vpack.c.b16 %v372, %v371
        %v395 = vpack.c.b16 %v374, %v373
        %v396 = vpack.c.b16 %v376, %v375
        %v397 = vpack.c.b16 %v378, %v377
        %v398 = vpack.c.b16 %v380, %v379
        %v399 = vpack.c.b16 %v382, %v381
        %v400 = vpack.c.b16 %v384, %v383
        %417 = vmatprep.subr.bf16.mxu0 0
        %418 = vmatpush1.bf16.msra.mxu0 %v385
        %419 = vmatprep.subr.bf16.mxu0 0
        %420 = vmatpush1.bf16.msra.mxu0 %v386
        %421 = vmatprep.subr.bf16.mxu0 0
        %422 = vmatpush1.bf16.msra.mxu0 %v387
        %423 = vmatprep.subr.bf16.mxu0 0
        %424 = vmatpush1.bf16.msra.mxu0 %v388
        %425 = vmatprep.subr.bf16.mxu0 0
        %426 = vmatpush1.bf16.msra.mxu0 %v389
        %427 = vmatprep.subr.bf16.mxu0 0
        %428 = vmatpush1.bf16.msra.mxu0 %v390
        %429 = vmatprep.subr.bf16.mxu0 0
        %430 = vmatpush1.bf16.msra.mxu0 %v391
        %431 = vmatprep.subr.bf16.mxu0 0
        %432 = vmatpush1.bf16.msra.mxu0 %v392
        %433 = vmatprep.subr.bf16.mxu0 0
        %434 = vmatpush1.bf16.msra.mxu0 %v393
        %435 = vmatprep.subr.bf16.mxu0 0
        %436 = vmatpush1.bf16.msra.mxu0 %v394
        %437 = vmatprep.subr.bf16.mxu0 0
        %438 = vmatpush1.bf16.msra.mxu0 %v395
        %439 = vmatprep.subr.bf16.mxu0 0
        %440 = vmatpush1.bf16.msra.mxu0 %v396
        %441 = vmatprep.subr.bf16.mxu0 0
        %442 = vmatpush1.bf16.msra.mxu0 %v397
        %443 = vmatprep.subr.bf16.mxu0 0
        %444 = vmatpush1.bf16.msra.mxu0 %v398
        %445 = vmatprep.subr.bf16.mxu0 0
        %446 = vmatpush1.bf16.msra.mxu0 %v399
        %447 = vmatprep.subr.bf16.mxu0 0
        %448 = vmatpush1.bf16.msra.mxu0 %v400
        %449 = vmatprep.mubr.bf16.mxu0 %v310
        %450 = vmatmul.mubr.bf16.gmra.mrb[0].mxu0 %v309
        %v451 = vpop.f32.mrb[0].mxu0
        %v452 = vadd.f32 0.0, %v451
        %v453 = vpop.f32.mrb[0].mxu0
        %v454 = vpop.f32.mrb[0].mxu0
        %v455 = vadd.f32 0.0, %v454
        %v456 = vpop.f32.mrb[0].mxu0
        %457 = vmatprep.mubr.bf16.mxu0 %v312
        %458 = vmatmul.mubr.bf16.gmra.mrb[0].mxu0 %v311
        %v459 = vpop.f32.mrb[0].mxu0
        %v460 = vadd.f32 0.0, %v459
        %v461 = vpop.f32.mrb[0].mxu0
        %v462 = vpop.f32.mrb[0].mxu0
        %v463 = vadd.f32 0.0, %v462
        %v464 = vpop.f32.mrb[0].mxu0
        %465 = vmatprep.mubr.bf16.mxu0 %v314
        %466 = vmatmul.mubr.bf16.gmra.mrb[0].mxu0 %v313
        %v467 = vpop.f32.mrb[0].mxu0
        %v468 = vadd.f32 0.0, %v467
        %v469 = vpop.f32.mrb[0].mxu0
        %v470 = vpop.f32.mrb[0].mxu0
        %v471 = vadd.f32 0.0, %v470
        %v472 = vpop.f32.mrb[0].mxu0
        %473 = vdwg.mxu0
        %v474 = vadd.f32 %v247, %v452
        %v475 = vadd.f32 %v248, %v455
        %v476 = vadd.f32 %v249, %v460
        %v477 = vadd.f32 %v250, %v463
        %v478 = vadd.f32 %v251, %v468
        %v479 = vadd.f32 %v252, %v471
        %480 = vst [vmem:[%s231] sm:$0xff] %v474
        %481 = vst [vmem:[%s231 + $0x8] sm:$0xff] %v475
        %482 = vst [vmem:[%s231 + $0x10] sm:$0xff] %v476
        %483 = vst [vmem:[%s231 + $0x18] sm:$0xff] %v477
        %484 = vst [vmem:[%s231 + $0x20] sm:$0xff] %v478
        %485 = vst [vmem:[%s231 + $0x28] sm:$0xff] %v479
        %s486 = sand.u32 %s107, 1
        %s487 = scalar_lea.sflag [#allocation4], %s486
        %s488 = sand.u32 %s107, 1
        %s489 = smul.addr %s488, 48
        %s490 = scalar_lea.vmem [#allocation7], %s489
        // Predicated region
        $region41: #{tpu_custom_call.1} parent=27 // pred_check
          %p491 = pneg %p117
        $region42: #{tpu_custom_call.1} parent=27 // pred_check_branch
          %493 = sbr.rel (%p491) target = $region44
        $region43: #{tpu_custom_call.1} parent=27 // pred_region
          %s494 = smul.u32 6, %s27
          %s496 = ssub.s32 768, 768
          %497 = vsyncadd %s487, %s496
          %s498 = smul.addr %s494, 3
          %s499 = sadd.s32 %s28, %s498
          %s500 = smul.addr %s499, 128
          %s501 = scalar_lea.hbm %s2, %s500
          %s502 = sshll.u32 %s490, 4
          %s503 = int_to_ptr.vmem [resolvable:$true] %s502
          %508 = dma.vmem_to_hbm [thread:$0]  %s503, 768, %s501, %s487, 128, 384, 8
        $region44: #{tpu_custom_call.1} parent=27 // pred_fallthru
          _
      $region28: #{tpu_custom_call.1} parent=5 // pred_fallthru
        _
      %p509 = scmp.le.s32.totalorder 2, %s17
      // Predicated region
      $region45: #{tpu_custom_call.1} parent=5 // pred_check
        %p510 = pneg %p509
      $region46: #{tpu_custom_call.1} parent=5 // pred_check_branch
        %512 = sbr.rel (%p510) target = $region48
      $region47: #{tpu_custom_call.1} parent=5 // pred_region
        %s513 = ssub.s32 %s17, 2
        // Predicated region
        $region49: #{tpu_custom_call.1} parent=47 // pred_check
          %p514 = pneg %p123
        $region50: #{tpu_custom_call.1} parent=47 // pred_check_branch
          %516 = sbr.rel (%p514) target = $region52
        $region51: #{tpu_custom_call.1} parent=47 // pred_region
          %s517 = sand.u32 %s108, 1
          %s518 = scalar_lea.sflag [#allocation4], %s517
          %s519 = sand.u32 %s108, 1
          %s520 = smul.addr %s519, 48
          %s521 = scalar_lea.vmem [#allocation7], %s520
          %522 = dma.done %s518, 768
        $region52: #{tpu_custom_call.1} parent=47 // pred_fallthru
          _
      $region48: #{tpu_custom_call.1} parent=5 // pred_fallthru
        _
    $region6: #{tpu_custom_call.1} parent=1 // loop_footer
      %s21 = sadd.s32 1, %s17
    $region7: #{tpu_custom_call.1} parent=1 // loop_footer_branch
      %16 = sbr.rel target = $region3
    $region8: #{tpu_custom_call.1} parent=1 // loop_exit
      _
    %523 = vsyncpa [#allocation3], 1
    %s524 = scalar_lea.sflag [#allocation3], 1
    %525 = vsyncpa %s524, 1
    %526 = vsyncpa [#allocation6], 1
    %s527 = scalar_lea.sflag [#allocation6], 1
    %528 = vsyncpa %s527, 1
    %529 = vsyncpa [#allocation4], 1
    %s530 = scalar_lea.sflag [#allocation4], 1
    %531 = vsyncpa %s530, 1

</llo_original>
